<compile_context>
chip_gen: v7x
topology: tpu7x:2x2x1
jax: 0.10.0
libtpu: 0.0.40
codegen_flags: <defaults>
</compile_context>

<pallas_src>
import jax
import jax.numpy as jnp
from jax.experimental import pallas as pl
from jax.experimental.pallas import tpu as pltpu


def _head_level_kernel(x_ref, wt_ref, col_ref, coord_ref, o_ref):
    """One (batch, hw-tile) block of one pyramid level: 1x1 conv + YOLO decode.

    x_ref     : (C, thw)   f32  NCHW activations (channels x spatial positions)
    wt_ref    : (OC, C)    bf16 1x1-conv weight (PyTorch (OC,C,1,1) squeezed)
    col_ref   : (OC, 8)    f32  per-channel constants:
                col0 bias, col1 sig_scale, col2 wh_scale (anchor*stride),
                col3 gx (stride if t==0), col4 gy (stride if t==1), col5 is_wh
    coord_ref : (2, thw)   f32  row0 = cell x (w = p%G), row1 = cell y (h = p//G)
    o_ref     : (OC, thw)  f32  decoded output (lane-dense along spatial positions)
    """
    # 1x1 conv == matmul over channels (MXU, bf16 in, f32 accumulate).
    x = x_ref[...].astype(jnp.bfloat16)
    v = jnp.dot(wt_ref[...], x, preferred_element_type=jnp.float32)

    bias = col_ref[:, 0:1]
    sig_scale = col_ref[:, 1:2]
    wh_scale = col_ref[:, 2:3]
    gx = col_ref[:, 3:4]
    gy = col_ref[:, 4:5]
    is_wh = col_ref[:, 5:6]

    v = v + bias

    # One EUP exp pass + two approx (EUP) reciprocals instead of sigmoid + exp.
    n = jnp.exp(-v)
    sig = pl.reciprocal(1.0 + n, approx=True)                     # sigmoid(v)
    # exp(v) = 1/exp(-v); gated to wh rows so an overflow never meets a zero scale.
    # TODO(synk): for |v| >~ 88 this diverges from exp(v) (flush-to-zero / inf);
    # benign for trained models, clamp v if raw logits can be extreme.
    e = jnp.where(is_wh > 0.5, pl.reciprocal(n, approx=True), 0.0)

    grid_term = gx * coord_ref[0:1, :] + gy * coord_ref[1:2, :]   # (OC,1)*(1,thw)
    o_ref[...] = sig * sig_scale + e * wh_scale + grid_term


def _round_up(x, m):
    return ((x + m - 1) // m) * m


def _level_forward(x, w, b, anchor, stride, A, T, max_thw=2048):
    """One pyramid level, eval mode.

    x: (B, C, G, G) f32 NCHW; w: (OC, C) f32; b: (OC,) f32; anchor: (A, 2) f32.
    Returns (B, G*G*A, T) f32 with row order (h, w, a) — same as the PyTorch view.
    """
    B, C, G, _ = x.shape
    HW = G * G
    OC = A * T

    # ---- spatial (lane) tiling -------------------------------------------
    thw = HW if HW <= max_thw else max_thw
    n_t = pl.cdiv(HW, thw)
    # v7x megacore: prefer >=2 grid steps so both TensorCores get work.
    if B * n_t < 2 and HW >= 256:
        thw = _round_up(pl.cdiv(HW, 2), 128)
        n_t = pl.cdiv(HW, thw)

    x3 = x.reshape(B, C, HW)            # free reshape, NCHW consumed directly

    # ---- per-output-channel decode constants (OC, 8) ----------------------
    c_idx = jnp.arange(OC)
    t_idx = c_idx % T
    a_idx = c_idx // T
    s = jnp.float32(stride)
    sig_scale = jnp.where(t_idx < 2, s, jnp.where(t_idx >= 4, 1.0, 0.0))
    is_wh = ((t_idx >= 2) & (t_idx < 4)).astype(jnp.float32)
    wh_scale = is_wh * anchor[a_idx, jnp.clip(t_idx - 2, 0, 1)] * s
    gx = jnp.where(t_idx == 0, s, 0.0)
    gy = jnp.where(t_idx == 1, s, 0.0)
    zeros = jnp.zeros((OC,), jnp.float32)
    col = jnp.stack([b.astype(jnp.float32), sig_scale, wh_scale, gx, gy,
                     is_wh, zeros, zeros], axis=1)                  # (OC, 8)

    # ---- per-position cell coordinates, merged into one (2, HW) input -----
    p = jnp.arange(HW, dtype=jnp.int32)
    coord = jnp.stack([(p % G).astype(jnp.float32),
                       (p // G).astype(jnp.float32)], axis=0)       # (2, HW)

    wt = w.astype(jnp.bfloat16)                                     # (OC, C), tiny

    # ---- explicit VMEM budget (double-buffered x + out dominate) ----------
    need = 2 * (C * thw * 4 + OC * thw * 4 + 2 * thw * 4) + OC * C * 2 + OC * 8 * 4
    vmem_limit = int(min(64 * 2**20, max(32 * 2**20, 3 * need)))

    out = pl.pallas_call(
        _head_level_kernel,
        out_shape=jax.ShapeDtypeStruct((B, OC, HW), jnp.float32),
        grid=(B, n_t),
        in_specs=[
            pl.BlockSpec((None, C, thw), lambda bi, j: (bi, 0, j)),
            pl.BlockSpec((OC, C), lambda bi, j: (0, 0)),
            pl.BlockSpec((OC, 8), lambda bi, j: (0, 0)),
            pl.BlockSpec((2, thw), lambda bi, j: (0, j)),
        ],
        out_specs=pl.BlockSpec((None, OC, thw), lambda bi, j: (bi, 0, j)),
        compiler_params=pltpu.CompilerParams(
            dimension_semantics=("parallel", "parallel"),
            vmem_limit_bytes=vmem_limit),
    )(x3, wt, col, coord)

    # (B, OC, HW) -> (B, G*G*A, T): the same permute the PyTorch module does,
    # applied only to the small decoded output (not the activations).
    return out.reshape(B, A, T, G, G).transpose(0, 3, 4, 1, 2).reshape(B, G * G * A, T)


def head_forward(xs, weights, biases, anchors, strides, A, T, max_thw=2048):
    """Eval-mode forward of the YOLOv4 head: one fused Pallas call per pyramid level."""
    zs = [_level_forward(xs[i], weights[i], biases[i], anchors[i],
                         strides[i], A, T, max_thw=max_thw)
          for i in range(len(xs))]
    return jnp.concatenate(zs, axis=1)
    # TODO(synk): training-mode branch (in-place write-back into the python input list)
    # is host-side list mutation with no kernel content; only eval-mode cat(z, 1) is produced.


def head_forward_ref(xs, weights, biases, anchors, strides, A, T):
    """Pure-JAX reference (same bf16 matmul feed, f32 decode)."""
    zs = []
    for i, x in enumerate(xs):
        B, C, G, _ = x.shape
        xb = jnp.transpose(x, (0, 2, 3, 1)).astype(jnp.bfloat16)    # (B,G,G,C)
        wb = weights[i].astype(jnp.bfloat16)                        # (OC,C)
        v = jnp.einsum('bhwc,oc->bhwo', xb, wb,
                       preferred_element_type=jnp.float32) + biases[i]
        v = v.reshape(B, G, G, A, T)
        ww = jnp.broadcast_to(jnp.arange(G, dtype=jnp.float32).reshape(1, 1, G, 1, 1),
                              (1, G, G, 1, 1))
        hh = jnp.broadcast_to(jnp.arange(G, dtype=jnp.float32).reshape(1, G, 1, 1, 1),
                              (1, G, G, 1, 1))
        grid = jnp.concatenate([ww, hh], axis=-1)                   # (1,G,G,1,2)
        xy = (jax.nn.sigmoid(v[..., :2]) + grid) * strides[i]
        wh = jnp.exp(v[..., 2:4]) * anchors[i] * strides[i]
        conf = jax.nn.sigmoid(v[..., 4:])
        y = jnp.concatenate([xy, wh, conf], axis=-1)
        zs.append(y.reshape(B, G * G * A, T))
    return jnp.concatenate(zs, axis=1)


if __name__ == "__main__":
    # Small deterministic config consistent with the module (img=128, strides 8/16/32).
    num_classes = 1
    T = num_classes + 5          # targets
    A = 3                        # num_anchors
    strides = [8, 16, 32]
    lst_channels = [8, 16, 32]
    grids = [16, 8, 4]
    B = 2
    OC = A * T

    key = jax.random.PRNGKey(0)
    k_anch, key = jax.random.split(key)
    anchors = jax.random.uniform(k_anch, (len(strides), A, 2),
                                 dtype=jnp.float32, minval=0.5, maxval=4.0)

    weights, biases, xs = [], [], []
    for C, G in zip(lst_channels, grids):
        kw, kb, kx, key = jax.random.split(key, 4)
        # 1x1 conv weight in natural PyTorch layout (OC, C) (the (1,1) spatial squeezed).
        weights.append(jax.random.normal(kw, (OC, C), dtype=jnp.float32) * 0.1)
        biases.append(jax.random.normal(kb, (OC,), dtype=jnp.float32) * 0.1)
        xs.append(jax.random.normal(kx, (B, C, G, G), dtype=jnp.float32))

    out = head_forward(xs, weights, biases, anchors, strides, A, T)
    out = jax.block_until_ready(out)

    ref = head_forward_ref(xs, weights, biases, anchors, strides, A, T)
    expected_rows = sum(A * g * g for g in grids)
    assert out.shape == (B, expected_rows, T), out.shape
    # approx=True reciprocals -> slightly loosened tolerance vs. the f32 reference.
    assert jnp.allclose(out, ref, rtol=5e-3, atol=5e-3), "mismatch vs reference"

    print("KERNEL_OK")
</pallas_src>

<mosaic_0001>
module attributes {stable_mosaic.version = 11 : i64} {
  func.func @_head_level_kernel(%arg0: i32, %arg1: i32, %arg2: memref<1x8x256xf32, #tpu.memory_space<vmem>>, %arg3: memref<18x8xbf16, #tpu.memory_space<vmem>>, %arg4: memref<18x8xf32, #tpu.memory_space<vmem>>, %arg5: memref<2x256xf32, #tpu.memory_space<vmem>>, %arg6: memref<1x18x256xf32, #tpu.memory_space<vmem>>) attributes {dimension_semantics = [#tpu.dimension_semantics<parallel>, #tpu.dimension_semantics<parallel>], iteration_bounds = array<i64: 2, 1>, scalar_prefetch = 0 : i64, scratch_operands = 0 : i64, tpu.core_type = #tpu.core_type<tc>, window_params = [{transform_indices = @transform_0, window_bounds = array<i64: 1, 8, 256>}, {pipeline_mode = #tpu.pipeline_mode<synchronous>, transform_indices = @transform_1, window_bounds = array<i64: 18, 8>}, {pipeline_mode = #tpu.pipeline_mode<synchronous>, transform_indices = @transform_2, window_bounds = array<i64: 18, 8>}, {transform_indices = @transform_3, window_bounds = array<i64: 2, 256>}, {transform_indices = @transform_4, window_bounds = array<i64: 1, 18, 256>}]} {
    %c0 = arith.constant 0 : index
    %c0_0 = arith.constant 0 : index
    %c0_1 = arith.constant 0 : index
    %0 = vector.load %arg2[%c0, %c0_0, %c0_1] : memref<1x8x256xf32, #tpu.memory_space<vmem>>, vector<1x8x256xf32>
    %1 = vector.shape_cast %0 : vector<1x8x256xf32> to vector<8x256xf32>
    %2 = arith.truncf %1 : vector<8x256xf32> to vector<8x256xbf16>
    %c0_2 = arith.constant 0 : index
    %c0_3 = arith.constant 0 : index
    %3 = vector.load %arg3[%c0_2, %c0_3] : memref<18x8xbf16, #tpu.memory_space<vmem>>, vector<18x8xbf16>
    %cst = arith.constant dense<0.000000e+00> : vector<18x256xf32>
    %4 = tpu.matmul %3, %2, %cst {dimension_numbers = #tpu.dot_dimension_numbers<[1], [0], [0], [1], [0, 0, 1, 1], [], []>} : vector<18x8xbf16>, vector<8x256xbf16>, vector<18x256xf32> -> vector<18x256xf32>
    %c0_4 = arith.constant 0 : index
    %c0_5 = arith.constant 0 : index
    %5 = vector.load %arg4[%c0_4, %c0_5] : memref<18x8xf32, #tpu.memory_space<vmem>>, vector<18x1xf32>
    %c0_6 = arith.constant 0 : index
    %c1 = arith.constant 1 : index
    %6 = vector.load %arg4[%c0_6, %c1] : memref<18x8xf32, #tpu.memory_space<vmem>>, vector<18x1xf32>
    %c0_7 = arith.constant 0 : index
    %c2 = arith.constant 2 : index
    %7 = vector.load %arg4[%c0_7, %c2] : memref<18x8xf32, #tpu.memory_space<vmem>>, vector<18x1xf32>
    %c0_8 = arith.constant 0 : index
    %c3 = arith.constant 3 : index
    %8 = vector.load %arg4[%c0_8, %c3] : memref<18x8xf32, #tpu.memory_space<vmem>>, vector<18x1xf32>
    %c0_9 = arith.constant 0 : index
    %c4 = arith.constant 4 : index
    %9 = vector.load %arg4[%c0_9, %c4] : memref<18x8xf32, #tpu.memory_space<vmem>>, vector<18x1xf32>
    %c0_10 = arith.constant 0 : index
    %c5 = arith.constant 5 : index
    %10 = vector.load %arg4[%c0_10, %c5] : memref<18x8xf32, #tpu.memory_space<vmem>>, vector<18x1xf32>
    %11 = vector.broadcast %5 : vector<18x1xf32> to vector<18x256xf32>
    %12 = arith.addf %4, %11 : vector<18x256xf32>
    %cst_11 = arith.constant 0.000000e+00 : f32
    %13 = vector.broadcast %cst_11 : f32 to vector<18x256xf32>
    %14 = arith.subf %13, %12 : vector<18x256xf32>
    %15 = math.exp %14 : vector<18x256xf32>
    %cst_12 = arith.constant 1.000000e+00 : f32
    %16 = vector.broadcast %cst_12 : f32 to vector<18x256xf32>
    %17 = arith.addf %16, %15 : vector<18x256xf32>
    %18 = tpu.reciprocal %17 {approx = true} : vector<18x256xf32> -> vector<18x256xf32>
    %cst_13 = arith.constant 5.000000e-01 : f32
    %19 = vector.broadcast %cst_13 : f32 to vector<18x1xf32>
    %20 = arith.cmpf ogt, %10, %19 : vector<18x1xf32>
    %21 = tpu.reciprocal %15 {approx = true} : vector<18x256xf32> -> vector<18x256xf32>
    %cst_14 = arith.constant 0.000000e+00 : f32
    %22 = vector.shape_cast %20 : vector<18x1xi1> to vector<18x1xi1>
    %23 = vector.broadcast %22 : vector<18x1xi1> to vector<18x256xi1>
    %24 = vector.broadcast %cst_14 : f32 to vector<18x256xf32>
    %25 = arith.select %23, %21, %24 : vector<18x256xi1>, vector<18x256xf32>
    %c0_15 = arith.constant 0 : index
    %c0_16 = arith.constant 0 : index
    %26 = vector.load %arg5[%c0_15, %c0_16] : memref<2x256xf32, #tpu.memory_space<vmem>>, vector<1x256xf32>
    %27 = vector.broadcast %8 : vector<18x1xf32> to vector<18x256xf32>
    %28 = vector.broadcast %26 : vector<1x256xf32> to vector<18x256xf32>
    %29 = arith.mulf %27, %28 : vector<18x256xf32>
    %c1_17 = arith.constant 1 : index
    %c0_18 = arith.constant 0 : index
    %30 = vector.load %arg5[%c1_17, %c0_18] : memref<2x256xf32, #tpu.memory_space<vmem>>, vector<1x256xf32>
    %31 = vector.broadcast %9 : vector<18x1xf32> to vector<18x256xf32>
    %32 = vector.broadcast %30 : vector<1x256xf32> to vector<18x256xf32>
    %33 = arith.mulf %31, %32 : vector<18x256xf32>
    %34 = arith.addf %29, %33 : vector<18x256xf32>
    %35 = vector.broadcast %6 : vector<18x1xf32> to vector<18x256xf32>
    %36 = arith.mulf %18, %35 : vector<18x256xf32>
    %37 = vector.broadcast %7 : vector<18x1xf32> to vector<18x256xf32>
    %38 = arith.mulf %25, %37 : vector<18x256xf32>
    %39 = arith.addf %36, %38 : vector<18x256xf32>
    %40 = arith.addf %39, %34 : vector<18x256xf32>
    %c0_19 = arith.constant 0 : index
    %c0_20 = arith.constant 0 : index
    %c0_21 = arith.constant 0 : index
    %41 = vector.load %arg6[%c0_19, %c0_20, %c0_21] : memref<1x18x256xf32, #tpu.memory_space<vmem>>, vector<1x18x256xf32>
    %42 = vector.shape_cast %41 : vector<1x18x256xf32> to vector<18x256xf32>
    %43 = vector.shape_cast %40 : vector<18x256xf32> to vector<1x18x256xf32>
    tpu.vector_store %arg6[%c0_19, %c0_20, %c0_21], %43 {strides = array<i32>} : memref<1x18x256xf32, #tpu.memory_space<vmem>>, vector<1x18x256xf32>,
    return
  }
  func.func @transform_0(%arg0: i32, %arg1: i32) -> (i32, i32, i32) {
    %c0_i32 = arith.constant 0 : i32
    %c0_i32_0 = arith.constant 0 : i32
    return %arg0, %c0_i32, %arg1 : i32, i32, i32
  }
  func.func @transform_1(%arg0: i32, %arg1: i32) -> (i32, i32) {
    %c0_i32 = arith.constant 0 : i32
    %c0_i32_0 = arith.constant 0 : i32
    %c0_i32_1 = arith.constant 0 : i32
    return %c0_i32, %c0_i32_0 : i32, i32
  }
  func.func @transform_2(%arg0: i32, %arg1: i32) -> (i32, i32) {
    %c0_i32 = arith.constant 0 : i32
    %c0_i32_0 = arith.constant 0 : i32
    %c0_i32_1 = arith.constant 0 : i32
    return %c0_i32, %c0_i32_0 : i32, i32
  }
  func.func @transform_3(%arg0: i32, %arg1: i32) -> (i32, i32) {
    %c0_i32 = arith.constant 0 : i32
    %c0_i32_0 = arith.constant 0 : i32
    return %c0_i32, %arg1 : i32, i32
  }
  func.func @transform_4(%arg0: i32, %arg1: i32) -> (i32, i32, i32) {
    %c0_i32 = arith.constant 0 : i32
    %c0_i32_0 = arith.constant 0 : i32
    return %arg0, %c0_i32, %arg1 : i32, i32, i32
  }
}

</mosaic_0001>

<llo_original>
// kernel: tpu_custom_call.1
$region0: #{tpu_custom_call.1}
  #allocation0 [shape = 'u32[]', space=smem, size = 0x4, offset = 0x4, fixed_abs, tag = 'smem constant byte address 0x4 - core index']
  #allocation1 [shape = 'u32[144,128]{1,0:T(1,128)}', space=vmem, size = 0x12000, scoped, tag = 'internal scratch']
  %s0 = inlined_call_operand.vmem [shape: f32[2,8,256], index: 0, kind: input, shape index: {}]
  %s1 = inlined_call_operand.vmem [shape: bf16[18,8], index: 1, kind: input, shape index: {}]
  %s2 = inlined_call_operand.vmem [shape: f32[18,8], index: 2, kind: input, shape index: {}]
  %s3 = inlined_call_operand.vmem [shape: f32[2,256], index: 3, kind: input, shape index: {}]
  %s4 = inlined_call_operand.vmem [shape: f32[2,18,256], index: 4, kind: output, shape index: {}]
  %s5 = sld [smem:[#allocation0]]
  $region49: #{tpu_custom_call.1} parent=0
    _
  %s7 = ssub.s32 1, %s5
  %s8 = scalar_select 0, %s7, %s5
  loop: start=0, step=1, limit=4
  $region2: #{tpu_custom_call.1} parent=0 // loop_pre_header
    _
  $region3: #{tpu_custom_call.1} parent=0 // loop_header
    %s10 = sphi 0, %s14
    %p11 = scmp.ge.s32.totalorder %s10, 4
    %s17 = sphi 0, %s29
    %s18 = sphi 0, %s25
    %s19 = sphi 0, %s17
    %s20 = sphi 0, %s18
    %s21 = sphi 0, %s19
    %s22 = sphi 0, %s20
    %s34 = sphi 0, %s36
    %s37 = sphi 0, %s34
    %s38 = sphi 0, %s37
    %s54 = sphi 0, %s38
    %s58 = sphi 0, %s58
    %s60 = sphi 0, %s58
    %s61 = sphi 0, %s60
    %s75 = sphi 0, %s61
    %s79 = sphi 0, %s79
    %s81 = sphi 0, %s79
    %s82 = sphi 0, %s81
    %s96 = sphi 0, %s82
    %s102 = sphi 0, %s104
    %s105 = sphi 0, %s102
    %s106 = sphi 0, %s105
    %s122 = sphi 0, %s106
    %s130 = sphi 0, %s132
    %s133 = sphi 0, %s130
    %s134 = sphi 0, %s133
    %s150 = sphi 0, %s134
  $region4: #{tpu_custom_call.1} parent=0 // loop_header_branch
    %13 = sbr.rel (%p11) target = $region8
  $region5: #{tpu_custom_call.1} parent=0 // loop_body
    %s15 = ssub.s32 %s10, 1
    %s16 = ssub.s32 %s10, 2
    %s23 = sadd.s32 1, %s18
    %p24 = scmp.ge.s32.totalorder %s23, 1
    %s25 = scalar_select %p24, 0, %s23
    %s26 = sadd.s32 1, %s17
    %s27 = scalar_select %p24, %s26, %s17
    %p28 = scmp.ge.s32.totalorder %s27, 2
    %s29 = scalar_select %p28, 0, %s27
    %s30 = ssub.s32 %s17, %s29
    %s31 = ssub.s32 %s18, %s25
    %s32 = sor.u32 %s30, %s31
    %p33 = scmp.eq.s32.totalorder %s32, 0
    %s35 = sadd.s32 %s34, 1
    %s36 = scalar_select %p33, %s34, %s35
    %p39 = pneg %p33
    %p40 = scmp.eq.s32.totalorder %s10, 1
    %p41 = por %p39, %p40
    %p42 = scmp.ne.s32.totalorder %s34, %s37
    %p43 = scmp.eq.s32.totalorder %s10, 0
    %p44 = por %p42, %p43
    %p45 = scmp.ne.s32.totalorder %s34, %s37
    %p46 = scmp.eq.s32.totalorder %s15, 1
    %p47 = por %p45, %p46
    %p48 = scmp.ne.s32.totalorder %s37, %s38
    %p49 = scmp.eq.s32.totalorder %s15, 0
    %p50 = por %p48, %p49
    %p51 = scmp.ne.s32.totalorder %s37, %s38
    %p52 = scmp.eq.s32.totalorder %s16, 1
    %p53 = por %p51, %p52
    %p55 = scmp.ne.s32.totalorder %s38, %s54
    %p56 = scmp.eq.s32.totalorder %s16, 0
    %p57 = por %p55, %p56
    %s59 = sadd.s32 %s58, 1
    %p62 = scmp.eq.s32.totalorder %s10, 1
    %p63 = scmp.ne.s32.totalorder %s58, %s60
    %p64 = scmp.eq.s32.totalorder %s10, 0
    %p65 = por %p63, %p64
    %p66 = scmp.ne.s32.totalorder %s58, %s60
    %p67 = scmp.eq.s32.totalorder %s15, 1
    %p68 = por %p66, %p67
    %p69 = scmp.ne.s32.totalorder %s60, %s61
    %p70 = scmp.eq.s32.totalorder %s15, 0
    %p71 = por %p69, %p70
    %p72 = scmp.ne.s32.totalorder %s60, %s61
    %p73 = scmp.eq.s32.totalorder %s16, 1
    %p74 = por %p72, %p73
    %p76 = scmp.ne.s32.totalorder %s61, %s75
    %p77 = scmp.eq.s32.totalorder %s16, 0
    %p78 = por %p76, %p77
    %s80 = sadd.s32 %s79, 1
    %p83 = scmp.eq.s32.totalorder %s10, 1
    %p84 = scmp.ne.s32.totalorder %s79, %s81
    %p85 = scmp.eq.s32.totalorder %s10, 0
    %p86 = por %p84, %p85
    %p87 = scmp.ne.s32.totalorder %s79, %s81
    %p88 = scmp.eq.s32.totalorder %s15, 1
    %p89 = por %p87, %p88
    %p90 = scmp.ne.s32.totalorder %s81, %s82
    %p91 = scmp.eq.s32.totalorder %s15, 0
    %p92 = por %p90, %p91
    %p93 = scmp.ne.s32.totalorder %s81, %s82
    %p94 = scmp.eq.s32.totalorder %s16, 1
    %p95 = por %p93, %p94
    %p97 = scmp.ne.s32.totalorder %s82, %s96
    %p98 = scmp.eq.s32.totalorder %s16, 0
    %p99 = por %p97, %p98
    %s100 = ssub.s32 %s18, %s25
    %p101 = scmp.eq.s32.totalorder %s100, 0
    %s103 = sadd.s32 %s102, 1
    %s104 = scalar_select %p101, %s102, %s103
    %p107 = pneg %p101
    %p108 = scmp.eq.s32.totalorder %s10, 1
    %p109 = por %p107, %p108
    %p110 = scmp.ne.s32.totalorder %s102, %s105
    %p111 = scmp.eq.s32.totalorder %s10, 0
    %p112 = por %p110, %p111
    %p113 = scmp.ne.s32.totalorder %s102, %s105
    %p114 = scmp.eq.s32.totalorder %s15, 1
    %p115 = por %p113, %p114
    %p116 = scmp.ne.s32.totalorder %s105, %s106
    %p117 = scmp.eq.s32.totalorder %s15, 0
    %p118 = por %p116, %p117
    %p119 = scmp.ne.s32.totalorder %s105, %s106
    %p120 = scmp.eq.s32.totalorder %s16, 1
    %p121 = por %p119, %p120
    %p123 = scmp.ne.s32.totalorder %s106, %s122
    %p124 = scmp.eq.s32.totalorder %s16, 0
    %p125 = por %p123, %p124
    %s126 = ssub.s32 %s17, %s29
    %s127 = ssub.s32 %s18, %s25
    %s128 = sor.u32 %s126, %s127
    %p129 = scmp.eq.s32.totalorder %s128, 0
    %s131 = sadd.s32 %s130, 1
    %s132 = scalar_select %p129, %s130, %s131
    %p135 = pneg %p129
    %p136 = scmp.eq.s32.totalorder %s10, 1
    %p137 = por %p135, %p136
    %p138 = scmp.ne.s32.totalorder %s130, %s133
    %p139 = scmp.eq.s32.totalorder %s10, 0
    %p140 = por %p138, %p139
    %p141 = scmp.ne.s32.totalorder %s130, %s133
    %p142 = scmp.eq.s32.totalorder %s15, 1
    %p143 = por %p141, %p142
    %p144 = scmp.ne.s32.totalorder %s133, %s134
    %p145 = scmp.eq.s32.totalorder %s15, 0
    %p146 = por %p144, %p145
    %p147 = scmp.ne.s32.totalorder %s133, %s134
    %p148 = scmp.eq.s32.totalorder %s16, 1
    %p149 = por %p147, %p148
    %p151 = scmp.ne.s32.totalorder %s134, %s150
    %p152 = scmp.eq.s32.totalorder %s16, 0
    %p153 = por %p151, %p152
    %p154 = scmp.le.s32.totalorder 1, %s10
    %p155 = scmp.lt.s32.totalorder %s10, 3
    %p156 = pnand %p154, %p155
    %p157 = pneg %p156
    // Predicated region
    $region9: #{tpu_custom_call.1} parent=5 // pred_check
      _
    $region10: #{tpu_custom_call.1} parent=5 // pred_check_branch
      %159 = sbr.rel (%p156) target = $region12
    $region11: #{tpu_custom_call.1} parent=5 // pred_region
      %s160 = ssub.s32 %s10, 1
      // Predicated region
      $region13: #{tpu_custom_call.1} parent=11 // pred_check
        %p161 = pneg %p71
      $region14: #{tpu_custom_call.1} parent=11 // pred_check_branch
        %163 = sbr.rel (%p161) target = $region16
      $region15: #{tpu_custom_call.1} parent=11 // pred_region
        _
      $region16: #{tpu_custom_call.1} parent=11 // pred_fallthru
        _
      // Predicated region
      $region17: #{tpu_custom_call.1} parent=11 // pred_check
        %p164 = pneg %p92
      $region18: #{tpu_custom_call.1} parent=11 // pred_check_branch
        %166 = sbr.rel (%p164) target = $region20
      $region19: #{tpu_custom_call.1} parent=11 // pred_region
        _
      $region20: #{tpu_custom_call.1} parent=11 // pred_fallthru
        _
      // Predicated region
      $region21: #{tpu_custom_call.1} parent=11 // pred_check
        %p167 = pneg %p118
      $region22: #{tpu_custom_call.1} parent=11 // pred_check_branch
        %169 = sbr.rel (%p167) target = $region24
      $region23: #{tpu_custom_call.1} parent=11 // pred_region
        %s170 = smul.u32 2, %s20
        %p171 = scmp.lt.s32.totalorder %s170, 1
        %s172 = scalar_select %p171, %s170, 1
        %s173 = smul.addr %s172, 2
        %s174 = scalar_lea.vmem %s3, %s173
        %s175 = smul.u32 2, %s20
      $region24: #{tpu_custom_call.1} parent=11 // pred_fallthru
        _
    $region12: #{tpu_custom_call.1} parent=5 // pred_fallthru
      _
    %p176 = scmp.lt.s32.totalorder %s10, 2
    // Predicated region
    $region25: #{tpu_custom_call.1} parent=5 // pred_check
      %p177 = pneg %p176
    $region26: #{tpu_custom_call.1} parent=5 // pred_check_branch
      %179 = sbr.rel (%p177) target = $region28
    $region27: #{tpu_custom_call.1} parent=5 // pred_region
      // Predicated region
      $region29: #{tpu_custom_call.1} parent=27 // pred_check
        %p180 = pneg %p44
      $region30: #{tpu_custom_call.1} parent=27 // pred_check_branch
        %182 = sbr.rel (%p180) target = $region32
      $region31: #{tpu_custom_call.1} parent=27 // pred_region
        %s183 = smul.u32 2, %s18
        %p184 = scmp.lt.s32.totalorder %s17, 1
        %s185 = scalar_select %p184, %s17, 1
        %p186 = scmp.lt.s32.totalorder %s183, 1
        %s187 = scalar_select %p186, %s183, 1
        %s188 = smul.addr %s185, 2
        %s189 = sadd.s32 %s187, %s188
        %s190 = smul.addr %s189, 8
        %s191 = scalar_lea.vmem %s0, %s190
        %s192 = smul.u32 2, %s18
      $region32: #{tpu_custom_call.1} parent=27 // pred_fallthru
        _
    $region28: #{tpu_custom_call.1} parent=5 // pred_fallthru
      _
    %p193 = scmp.le.s32.totalorder 1, %s10
    %p194 = scmp.lt.s32.totalorder %s10, 3
    %p195 = pnand %p193, %p194
    %p196 = pneg %p195
    // Predicated region
    $region33: #{tpu_custom_call.1} parent=5 // pred_check
      _
    $region34: #{tpu_custom_call.1} parent=5 // pred_check_branch
      %198 = sbr.rel (%p195) target = $region36
    $region35: #{tpu_custom_call.1} parent=5 // pred_region
      %s199 = ssub.s32 %s10, 1
      %s200 = smul.u32 2, %s20
      %p201 = scmp.lt.s32.totalorder %s19, 1
      %s202 = scalar_select %p201, %s19, 1
      %p203 = scmp.lt.s32.totalorder %s200, 1
      %s204 = scalar_select %p203, %s200, 1
      %s205 = smul.addr %s202, 2
      %s206 = sadd.s32 %s204, %s205
      %s207 = smul.addr %s206, 8
      %s208 = scalar_lea.vmem %s0, %s207
      %p209 = pneg %p50
      %p210 = pneg %p47
      %p211 = pneg %p71
      %p212 = pneg %p68
      %p213 = pneg %p92
      %p214 = pneg %p89
      %s215 = smul.u32 2, %s20
      %p216 = scmp.lt.s32.totalorder %s215, 1
      %s217 = scalar_select %p216, %s215, 1
      %s218 = smul.addr %s217, 2
      %s219 = scalar_lea.vmem %s3, %s218
      %p220 = pneg %p118
      %p221 = pneg %p115
      %p222 = pneg %p146
      %p223 = pneg %p143
      %s224 = smul.u32 2, %s20
      %p225 = scmp.lt.s32.totalorder %s19, 1
      %s226 = scalar_select %p225, %s19, 1
      %p227 = scmp.lt.s32.totalorder %s224, 1
      %s228 = scalar_select %p227, %s224, 1
      %s229 = smul.addr %s226, 6
      %s230 = sadd.s32 %s228, %s229
      %s231 = smul.addr %s230, 8
      %s232 = scalar_lea.vmem %s4, %s231
      %s233 = smul.u32 2, %s20
      %p234 = scmp.lt.s32.totalorder %s19, 1
      %s235 = scalar_select %p234, %s19, 1
      %p236 = scmp.lt.s32.totalorder %s233, 1
      %s237 = scalar_select %p236, %s233, 1
      %s238 = smul.addr %s235, 2
      %s239 = sadd.s32 %s237, %s238
      %s240 = smul.addr %s239, 8
      %s241 = scalar_lea.vmem %s0, %s240
      %s242 = smul.u32 2, %s20
      %s243 = smul.u32 2, %s20
      %p244 = scmp.lt.s32.totalorder %s243, 1
      %s245 = scalar_select %p244, %s243, 1
      %s246 = smul.addr %s245, 2
      %s247 = scalar_lea.vmem %s3, %s246
      %s248 = smul.u32 2, %s20
      %s249 = smul.u32 2, %s20
      %p250 = scmp.lt.s32.totalorder %s19, 1
      %s251 = scalar_select %p250, %s19, 1
      %p252 = scmp.lt.s32.totalorder %s249, 1
      %s253 = scalar_select %p252, %s249, 1
      %s254 = smul.addr %s251, 6
      %s255 = sadd.s32 %s253, %s254
      %s256 = smul.addr %s255, 8
      %s257 = scalar_lea.vmem %s4, %s256
      %s258 = smul.u32 2, %s20
      %v260 = vld [vmem:[%s241] sm:$0xff]
      %v261 = vld [vmem:[%s241 + $0x8] sm:$0xff]
      %v262 = vpack.c.bf16 %v260, %v260
      %v263 = vpack.c.bf16 %v261, %v261
      %v264 = vld [vmem:[%s1] sm:$0xf]
      %v265 = vld [vmem:[%s1 + $0x4] sm:$0xf]
      %v266 = vld [vmem:[%s1 + $0x8] sm:$0x1]
      %v267 = vld [vmem:[%s2] sm:$0xff]
      %v268 = vld [vmem:[%s2 + $0x8] sm:$0xff]
      %v269 = vld [vmem:[%s2 + $0x10] sm:$0x3]
      %271 = vset.pattern.permute.xlu0 0
      %272 = vperm.xlu0 %271, %v267
      %v273 = vpop.permute.xlu0 %272
      %276 = vset.pattern.permute.xlu0 0
      %277 = vperm.xlu0 %276, %v268
      %v278 = vpop.permute.xlu0 %277
      %281 = vset.pattern.permute.xlu0 0
      %282 = vperm.xlu0 %281, %v269
      %v283 = vpop.permute.xlu0 %282
      %v288 = vunpack.c.l.b16 %v264
      %v289 = vunpack.c.l.b16 %v265
      %v290 = vunpack.c.l.b16 %v266
      %v291 = vpack.c.b16 %v289, %v288
      %v292 = vpack.c.b16 %v290, %v290
      %vm293 = vcmask 64512
      %v295 = vsel %vm293, %v291, 0
      %v298 = vsel %vm293, %v292, 0
      %vm300 = vcmask 1043456
      %v302 = vsel %vm300, %v262, 0
      %v305 = vsel %vm300, %v263, 0
      %307 = vmatprep.subr.bf16.mxu0 %v305
      %308 = vmatpush1.bf16.msra.mxu0 %v302
      %309 = vmatprep.subr.bf16.mxu0 0
      %310 = vmatpush1.bf16.msra.mxu0 0
      %311 = vmatprep.subr.bf16.mxu0 0
      %312 = vmatpush1.bf16.msra.mxu0 0
      %313 = vmatprep.subr.bf16.mxu0 0
      %314 = vmatpush1.bf16.msra.mxu0 0
      %315 = vmatprep.subr.bf16.mxu0 0
      %316 = vmatpush1.bf16.msra.mxu0 0
      %317 = vmatprep.subr.bf16.mxu0 0
      %318 = vmatpush1.bf16.msra.mxu0 0
      %319 = vmatprep.subr.bf16.mxu0 0
      %320 = vmatpush1.bf16.msra.mxu0 0
      %321 = vmatprep.subr.bf16.mxu0 0
      %322 = vmatpush1.bf16.msra.mxu0 0
      %323 = vmatprep.subr.bf16.mxu0 0
      %324 = vmatpush1.bf16.msra.mxu0 0
      %325 = vmatprep.subr.bf16.mxu0 0
      %326 = vmatpush1.bf16.msra.mxu0 0
      %327 = vmatprep.subr.bf16.mxu0 0
      %328 = vmatpush1.bf16.msra.mxu0 0
      %329 = vmatprep.subr.bf16.mxu0 0
      %330 = vmatpush1.bf16.msra.mxu0 0
      %331 = vmatprep.subr.bf16.mxu0 0
      %332 = vmatpush1.bf16.msra.mxu0 0
      %333 = vmatprep.subr.bf16.mxu0 0
      %334 = vmatpush1.bf16.msra.mxu0 0
      %335 = vmatprep.subr.bf16.mxu0 0
      %336 = vmatpush1.bf16.msra.mxu0 0
      %337 = vmatprep.subr.bf16.mxu0 0
      %338 = vmatpush1.bf16.msra.mxu0 0
      %339 = vmatprep.mubr.bf16.mxu0 0
      %340 = vmatmul.mubr.bf16.gmra.mrb[0].mxu0 %v295
      %v341 = vpop.f32.mrb[0].mxu0
      %v342 = vadd.f32 %v273, %v341
      %v343 = vpop.f32.mrb[0].mxu0
      %v344 = vadd.f32 %v273, %v343
      %v345 = vpop.f32.mrb[0].mxu0
      %v346 = vadd.f32 %v278, %v345
      %v347 = vpop.f32.mrb[0].mxu0
      %v348 = vadd.f32 %v278, %v347
      %349 = vmatprep.mubr.bf16.mxu0 0
      %350 = vmatmul.mubr.bf16.gmra.mrb[0].mxu0 %v298
      %v351 = vpop.f32.mrb[0].mxu0
      %v352 = vadd.f32 %v283, %v351
      %v353 = vpop.f32.mrb[0].mxu0
      %v354 = vadd.f32 %v283, %v353
      %v355 = vpop.f32.mrb[0].mxu0
      %v356 = vpop.f32.mrb[0].mxu0
      %357 = vdwg.mxu0
      %v358 = vsub.f32 0.0, %v342
      %v359 = vsub.f32 0.0, %v344
      %v360 = vsub.f32 0.0, %v346
      %v361 = vsub.f32 0.0, %v348
      %v362 = vsub.f32 0.0, %v352
      %v363 = vsub.f32 0.0, %v354
      %v364 = vmul.f32 %v358, 1.442695
      %v365 = vpow.pop %v364
      %v366 = vmul.f32 %v359, 1.442695
      %v367 = vpow.pop %v366
      %v368 = vmul.f32 %v360, 1.442695
      %v369 = vpow.pop %v368
      %v370 = vmul.f32 %v361, 1.442695
      %v371 = vpow.pop %v370
      %v372 = vmul.f32 %v362, 1.442695
      %v373 = vpow.pop %v372
      %v374 = vmul.f32 %v363, 1.442695
      %v375 = vpow.pop %v374
      %v376 = vadd.f32 %v365, 1.0
      %v377 = vadd.f32 %v367, 1.0
      %v378 = vadd.f32 %v369, 1.0
      %v379 = vadd.f32 %v371, 1.0
      %v380 = vadd.f32 %v373, 1.0
      %v381 = vadd.f32 %v375, 1.0
      %v382 = vrcp.pop %v376
      %v383 = vrcp.pop %v377
      %v384 = vrcp.pop %v378
      %v385 = vrcp.pop %v379
      %v386 = vrcp.pop %v380
      %v387 = vrcp.pop %v381
      %vm388 = vcmp.gt.f32.partialorder %v267, 0.5
      %vm389 = vcmp.gt.f32.partialorder %v268, 0.5
      %vm390 = vcmp.gt.f32.partialorder %v269, 0.5
      %v391 = vrcp.pop %v365
      %v392 = vrcp.pop %v367
      %v393 = vrcp.pop %v369
      %v394 = vrcp.pop %v371
      %v395 = vrcp.pop %v373
      %v396 = vrcp.pop %v375
      %v397 = vsel %vm388, 1, 0
      %v398 = vsel %vm389, 1, 0
      %v399 = vsel %vm390, 1, 0
      %400 = vset.pattern.permute.xlu0 5
      %401 = vperm.xlu0 %400, %v397
      %v402 = vpop.permute.xlu0 %401
      %403 = vset.pattern.permute.xlu0 5
      %404 = vperm.xlu0 %403, %v398
      %v405 = vpop.permute.xlu0 %404
      %406 = vset.pattern.permute.xlu0 5
      %407 = vperm.xlu0 %406, %v399
      %v408 = vpop.permute.xlu0 %407
      %vm409 = vcmp.eq.s32.totalorder %v402, 1
      %vm410 = vcmp.eq.s32.totalorder %v405, 1
      %vm411 = vcmp.eq.s32.totalorder %v408, 1
      %v412 = vsel %vm409, %v391, 0.0
      %v413 = vsel %vm409, %v392, 0.0
      %v414 = vsel %vm410, %v393, 0.0
      %v415 = vsel %vm410, %v394, 0.0
      %v416 = vsel %vm411, %v395, 0.0
      %v417 = vsel %vm411, %v396, 0.0
      %v418 = vld [vmem:[%s247] ss:$2 sm:$0x3]
      %419 = vset.pattern.permute.xlu0 3
      %420 = vperm.xlu0 %419, %v267
      %v421 = vpop.permute.xlu0 %420
      %423 = vset.pattern.permute.xlu0 3
      %424 = vperm.xlu0 %423, %v268
      %v425 = vpop.permute.xlu0 %424
      %427 = vset.pattern.permute.xlu0 3
      %428 = vperm.xlu0 %427, %v269
      %v429 = vpop.permute.xlu0 %428
      %v432 = vlaneseq
      %v433 = vshrl.u32 %v432, 7
      %v434 = vsub.s32 0, %v433
      %v435 = vrot.slane %v418, %v434
      %v436 = vlaneseq
      %v437 = vshrl.u32 %v436, 7
      %v438 = vsub.s32 1, %v437
      %v439 = vrot.slane %v418, %v438
      %v442 = vmul.f32 %v421, %v435
      %v443 = vmul.f32 %v421, %v439
      %v444 = vmul.f32 %v425, %v435
      %v445 = vmul.f32 %v425, %v439
      %v446 = vmul.f32 %v429, %v435
      %v447 = vmul.f32 %v429, %v439
      %s448 = scalar_lea.vmem %s247, 1
      %v449 = vld [vmem:[%s448] ss:$2 sm:$0x3]
      %450 = vset.pattern.permute.xlu0 4
      %451 = vperm.xlu0 %450, %v267
      %v452 = vpop.permute.xlu0 %451
      %454 = vset.pattern.permute.xlu0 4
      %455 = vperm.xlu0 %454, %v268
      %v456 = vpop.permute.xlu0 %455
      %458 = vset.pattern.permute.xlu0 4
      %459 = vperm.xlu0 %458, %v269
      %v460 = vpop.permute.xlu0 %459
      %v463 = vlaneseq
      %v464 = vshrl.u32 %v463, 7
      %v465 = vsub.s32 0, %v464
      %v466 = vrot.slane %v449, %v465
      %v467 = vlaneseq
      %v468 = vshrl.u32 %v467, 7
      %v469 = vsub.s32 1, %v468
      %v470 = vrot.slane %v449, %v469
      %v473 = vmul.f32 %v452, %v466
      %v474 = vmul.f32 %v452, %v470
      %v475 = vmul.f32 %v456, %v466
      %v476 = vmul.f32 %v456, %v470
      %v477 = vmul.f32 %v460, %v466
      %v478 = vmul.f32 %v460, %v470
      %v479 = vadd.f32 %v442, %v473
      %v480 = vadd.f32 %v443, %v474
      %v481 = vadd.f32 %v444, %v475
      %v482 = vadd.f32 %v445, %v476
      %v483 = vadd.f32 %v446, %v477
      %v484 = vadd.f32 %v447, %v478
      %485 = vset.pattern.permute.xlu0 1
      %486 = vperm.xlu0 %485, %v267
      %v487 = vpop.permute.xlu0 %486
      %489 = vset.pattern.permute.xlu0 1
      %490 = vperm.xlu0 %489, %v268
      %v491 = vpop.permute.xlu0 %490
      %493 = vset.pattern.permute.xlu0 1
      %494 = vperm.xlu0 %493, %v269
      %v495 = vpop.permute.xlu0 %494
      %v497 = vmul.f32 %v382, %v487
      %v498 = vmul.f32 %v383, %v487
      %v499 = vmul.f32 %v384, %v491
      %v500 = vmul.f32 %v385, %v491
      %v501 = vmul.f32 %v386, %v495
      %v502 = vmul.f32 %v387, %v495
      %503 = vset.pattern.permute.xlu0 2
      %504 = vperm.xlu0 %503, %v267
      %v505 = vpop.permute.xlu0 %504
      %507 = vset.pattern.permute.xlu0 2
      %508 = vperm.xlu0 %507, %v268
      %v509 = vpop.permute.xlu0 %508
      %511 = vset.pattern.permute.xlu0 2
      %512 = vperm.xlu0 %511, %v269
      %v513 = vpop.permute.xlu0 %512
      %v515 = vmul.f32 %v412, %v505
      %v516 = vmul.f32 %v413, %v505
      %v517 = vmul.f32 %v414, %v509
      %v518 = vmul.f32 %v415, %v509
      %v519 = vmul.f32 %v416, %v513
      %v520 = vmul.f32 %v417, %v513
      %v521 = vadd.f32 %v497, %v515
      %v522 = vadd.f32 %v498, %v516
      %v523 = vadd.f32 %v499, %v517
      %v524 = vadd.f32 %v500, %v518
      %v525 = vadd.f32 %v501, %v519
      %v526 = vadd.f32 %v502, %v520
      %v527 = vadd.f32 %v521, %v479
      %v528 = vadd.f32 %v522, %v480
      %v529 = vadd.f32 %v523, %v481
      %v530 = vadd.f32 %v524, %v482
      %v531 = vadd.f32 %v525, %v483
      %v532 = vadd.f32 %v526, %v484
      %533 = vst [vmem:[%s257] sm:$0xff] %v527
      %534 = vst [vmem:[%s257 + $0x8] sm:$0xff] %v528
      %535 = vst [vmem:[%s257 + $0x10] sm:$0xff] %v529
      %536 = vst [vmem:[%s257 + $0x18] sm:$0xff] %v530
      %537 = vst [vmem:[%s257 + $0x20] sm:$0x3] %v531
      %538 = vst [vmem:[%s257 + $0x28] sm:$0x3] %v532
      %s539 = smul.u32 2, %s20
      %p540 = scmp.lt.s32.totalorder %s19, 1
      %s541 = scalar_select %p540, %s19, 1
      %p542 = scmp.lt.s32.totalorder %s539, 1
      %s543 = scalar_select %p542, %s539, 1
      %s544 = smul.addr %s541, 6
      %s545 = sadd.s32 %s543, %s544
      %s546 = smul.addr %s545, 8
      %s547 = scalar_lea.vmem %s4, %s546
      // Predicated region
      $region37: #{tpu_custom_call.1} parent=35 // pred_check
        %p548 = pneg %p143
      $region38: #{tpu_custom_call.1} parent=35 // pred_check_branch
        %550 = sbr.rel (%p548) target = $region40
      $region39: #{tpu_custom_call.1} parent=35 // pred_region
        %s551 = smul.u32 2, %s20
      $region40: #{tpu_custom_call.1} parent=35 // pred_fallthru
        _
    $region36: #{tpu_custom_call.1} parent=5 // pred_fallthru
      _
    %p552 = scmp.le.s32.totalorder 2, %s10
    // Predicated region
    $region41: #{tpu_custom_call.1} parent=5 // pred_check
      %p553 = pneg %p552
    $region42: #{tpu_custom_call.1} parent=5 // pred_check_branch
      %555 = sbr.rel (%p553) target = $region44
    $region43: #{tpu_custom_call.1} parent=5 // pred_region
      %s556 = ssub.s32 %s10, 2
      // Predicated region
      $region45: #{tpu_custom_call.1} parent=43 // pred_check
        %p557 = pneg %p149
      $region46: #{tpu_custom_call.1} parent=43 // pred_check_branch
        %559 = sbr.rel (%p557) target = $region48
      $region47: #{tpu_custom_call.1} parent=43 // pred_region
        %s560 = smul.u32 2, %s22
        %p561 = scmp.lt.s32.totalorder %s21, 1
        %s562 = scalar_select %p561, %s21, 1
        %p563 = scmp.lt.s32.totalorder %s560, 1
        %s564 = scalar_select %p563, %s560, 1
        %s565 = smul.addr %s562, 6
        %s566 = sadd.s32 %s564, %s565
        %s567 = smul.addr %s566, 8
        %s568 = scalar_lea.vmem %s4, %s567
      $region48: #{tpu_custom_call.1} parent=43 // pred_fallthru
        _
    $region44: #{tpu_custom_call.1} parent=5 // pred_fallthru
      _
  $region6: #{tpu_custom_call.1} parent=0 // loop_footer
    %s14 = sadd.s32 1, %s10
  $region7: #{tpu_custom_call.1} parent=0 // loop_footer_branch
    %9 = sbr.rel target = $region3
  $region8: #{tpu_custom_call.1} parent=0 // loop_exit
    _

</llo_original>
